<compile_context>
chip_gen: v6e
topology: v6e:2x2x1
jax: 0.10.0
libtpu: 0.0.40
codegen_flags: <defaults>
</compile_context>

<pallas_src>
import jax
import jax.numpy as jnp
import numpy as np
from jax.experimental import pallas as pl
from jax.experimental.pallas import tpu as pltpu


def _round_up(v: int, m: int) -> int:
    return ((v + m - 1) // m) * m


def _cdiv(a: int, b: int) -> int:
    return -(-a // b)


# ---------------------------------------------------------------------------
# Kernel
# ---------------------------------------------------------------------------

def _fill_seam(seam_ref, x_ref, prev_ref, next_ref, has_prev, has_next,
               s0, n, rows, halo, sub, n_ch):
    """Stage conceptual rows [s0 - halo, s0 + n + halo) of the extended tile
    [prev halo | x tile | next halo] into seam_ref[0 : n + 2*halo) as f32.
    Rows outside the segment are zero.  All ref-store starts are sublane
    aligned (the zero store is widened down to an aligned start and written
    first, then overwritten by the real-data store).  All args after the refs
    are static python ints / traced scalars; s0 >= 0, halo % sub == 0.
    """
    lo = s0 - halo
    hi = s0 + n + halo
    # rows >= `rows`  (next-tile halo, or zero padding past the segment)
    if hi > rows:
        if next_ref is None:
            z0 = ((rows - lo) // sub) * sub          # aligned, <= rows - lo
            seam_ref[z0:hi - lo, :] = jnp.zeros((hi - lo - z0, n_ch),
                                                jnp.float32)
        else:
            blk = next_ref[0:hi - rows, :].astype(jnp.float32)
            seam_ref[rows - lo:hi - lo, :] = jnp.where(
                has_next, blk, jnp.zeros_like(blk))
    # rows < 0  (previous-tile halo, or zero padding before the segment)
    if lo < 0:
        if prev_ref is None:
            seam_ref[0:-lo, :] = jnp.zeros((-lo, n_ch), jnp.float32)
        else:
            blk = prev_ref[halo + lo:halo, :].astype(jnp.float32)
            seam_ref[0:-lo, :] = jnp.where(has_prev, blk, jnp.zeros_like(blk))
    # rows inside this tile (written last: wins any overlap with the widened
    # zero store above)
    a = max(lo, 0)
    b = min(hi, rows)
    seam_ref[a - lo:b - lo, :] = x_ref[a:b, :].astype(jnp.float32)


def _window_avg_body(x_ref, o_ref, seam_ref, prev_ref, next_ref,
                     has_prev, has_next, *, window, pad, halo, sub, strips):
    """Strip-mined W-tap sliding average over one (rows, C) tile."""
    rows, n_ch = o_ref.shape
    inv_w = jnp.float32(1.0 / window)
    # TODO(synk): for large W (>= ~16) switch the reduction to a static banded
    # averaging matrix on the (otherwise idle) MXU instead of W VPU taps.
    for (s0, n) in strips:
        interior = (s0 - pad >= 0) and (s0 + n + pad <= rows)
        if interior:
            # every tap lives inside this tile -> read x_ref directly; the
            # (n, C) f32 accumulator stays in vregs for the whole strip.
            acc = x_ref[s0 - pad:s0 - pad + n, :].astype(jnp.float32)
            for k in range(1, window):
                acc = acc + x_ref[s0 - pad + k:s0 - pad + k + n,
                                  :].astype(jnp.float32)
        else:
            # seam strip: stage the (n + 2*halo)-row neighbourhood once into a
            # small f32 scratch (halo / zero filled), then read W contiguous
            # taps from it.
            _fill_seam(seam_ref, x_ref, prev_ref, next_ref, has_prev, has_next,
                       s0, n, rows, halo, sub, n_ch)
            base = halo - pad
            acc = seam_ref[base:base + n, :]
            for k in range(1, window):
                acc = acc + seam_ref[base + k:base + k + n, :]
        o_ref[s0:s0 + n, :] = (acc * inv_w).astype(o_ref.dtype)


def _make_multi_kernel(**kw):
    def kernel(prev_ref, x_ref, next_ref, o_ref, seam_ref):
        j = pl.program_id(1)
        _window_avg_body(x_ref, o_ref, seam_ref, prev_ref, next_ref,
                         j > 0, j < pl.num_programs(1) - 1, **kw)
    return kernel


def _make_single_kernel(**kw):
    def kernel(x_ref, o_ref, seam_ref):
        _window_avg_body(x_ref, o_ref, seam_ref, None, None, False, False, **kw)
    return kernel


# ---------------------------------------------------------------------------
# Wrapper
# ---------------------------------------------------------------------------

# ~2 MiB per block; with double-buffered in/out blocks the live footprint is
# ~4x this (+ tiny halos / seam scratch), comfortably inside the default
# scoped-VMEM limit on v5e (16 MiB) / v6e / v7x (32 MiB).
_TILE_BYTES = 2 * 1024 * 1024


def window_averaging(x: jax.Array, window_size: int) -> jax.Array:
    """Pallas equivalent of WindowAveraging.forward for x of shape (B, L, C).

    Matches torch.nn.functional.avg_pool1d(x.transpose(1,2), W, stride=1,
    padding=W//2).transpose(1,2): zero padding, always divided by W.
    Output length = L + 2*(W//2) - W + 1  (== L for odd W, L+1 for even W).
    """
    b, l, c = x.shape
    w = int(window_size)
    if w <= 1:
        return x
    pad = w // 2
    l_out = l + 2 * pad - w + 1                 # == l (odd W) or l + 1 (even W)
    esz = x.dtype.itemsize
    sub = 8 if esz >= 4 else (16 if esz == 2 else 32)
    halo = max(sub, _round_up(pad, sub))

    # Even W needs one trailing zero row so the kernel itself emits the extra
    # output row (no wrapper-side concatenate of y).
    l_base = max(l, l_out)
    row_bytes = c * esz
    tl_cap = max(2 * halo, (_TILE_BYTES // max(row_bytes, 1)) // halo * halo)

    want_tiles = _cdiv(l_base, tl_cap)
    if (b == 1 and want_tiles == 1 and l_base >= 8 * halo
            and l_base % (2 * halo) == 0):
        # Keep both v7x TensorCores busy when splitting costs no padding.
        # TODO(synk): make this generation-aware via pltpu.get_tpu_info().
        want_tiles = 2

    tl, l_work, nrt = l_base, l_base, 1
    if want_tiles > 1:
        tl0 = min(tl_cap, _round_up(_cdiv(l_base, want_tiles), halo))
        tl = None
        if l_base % halo == 0:
            # Prefer a tile size that divides l_base exactly (no row padding).
            t = tl0
            while t >= max(2 * halo, tl0 // 2):
                if l_base % t == 0:
                    tl = t
                    break
                t -= halo
        if tl is None:
            # TODO(synk): ragged in-kernel last tile would avoid this pad pass.
            tl = tl0
        l_work = _round_up(l_base, tl)
        nrt = l_work // tl
        if nrt == 1:
            tl, l_work = l_base, l_base
    multi = nrt > 1

    # Strip size: big enough to amortize per-strip overhead, small enough that
    # the per-strip f32 accumulator stays in vregs (and <= ~32 strips so the
    # statically-unrolled tap code stays small).
    strip = min(tl, max(halo, _round_up(
        max(_cdiv(tl, 32), _cdiv(16 * 1024, max(c * 4, 1))), halo)))
    ns = tl // strip
    strips = [(i * strip, strip) for i in range(ns)]
    if tl - ns * strip:
        strips.append((ns * strip, tl - ns * strip))
    seam_rows = _round_up(max(n for _, n in strips) + 2 * halo, sub)

    x_in = x
    if l_work > l:
        # Zero rows appended to each (per-batch) sequence are exactly
        # avg_pool1d's count_include_pad zero padding, so this is semantically
        # free; outputs past l_out are sliced off below.
        x_in = jnp.pad(x, ((0, 0), (0, l_work - l), (0, 0)))

    body_kw = dict(window=w, pad=pad, halo=halo, sub=sub, strips=tuple(strips))

    if multi:
        hbpt = tl // halo
        max_hb = l_work // halo - 1
        y = pl.pallas_call(
            _make_multi_kernel(**body_kw),
            out_shape=jax.ShapeDtypeStruct((b, l_work, c), x.dtype),
            grid=(b, nrt),
            in_specs=[
                pl.BlockSpec((None, halo, c),
                             lambda bi, j: (bi, jnp.maximum(j * hbpt - 1, 0), 0)),
                pl.BlockSpec((None, tl, c), lambda bi, j: (bi, j, 0)),
                pl.BlockSpec((None, halo, c),
                             lambda bi, j: (bi, jnp.minimum((j + 1) * hbpt,
                                                            max_hb), 0)),
            ],
            out_specs=pl.BlockSpec((None, tl, c), lambda bi, j: (bi, j, 0)),
            scratch_shapes=[pltpu.VMEM((seam_rows, c), jnp.float32)],
            compiler_params=pltpu.CompilerParams(
                dimension_semantics=("parallel", "parallel")),
        )(x_in, x_in, x_in)
    else:
        y = pl.pallas_call(
            _make_single_kernel(**body_kw),
            out_shape=jax.ShapeDtypeStruct((b, l_work, c), x.dtype),
            grid=(b,),
            in_specs=[pl.BlockSpec((None, l_work, c), lambda bi: (bi, 0, 0))],
            out_specs=pl.BlockSpec((None, l_work, c), lambda bi: (bi, 0, 0)),
            scratch_shapes=[pltpu.VMEM((seam_rows, c), jnp.float32)],
            compiler_params=pltpu.CompilerParams(
                dimension_semantics=("parallel",)),
        )(x_in)

    return y if l_work == l_out else y[:, :l_out, :]


# ---------------------------------------------------------------------------
# Reference + smoke test
# ---------------------------------------------------------------------------

def _reference(x: np.ndarray, window_size: int) -> np.ndarray:
    """Numpy reference mirroring avg_pool1d(stride=1, padding=W//2)."""
    x = np.asarray(x, dtype=np.float64)
    b, l, c = x.shape
    pad = window_size // 2
    xp = np.pad(x, ((0, 0), (pad, pad), (0, 0)))
    l_out = l + 2 * pad - window_size + 1
    out = np.zeros((b, l_out, c), np.float64)
    for k in range(window_size):
        out += xp[:, k:k + l_out, :]
    return out / window_size


if __name__ == "__main__":
    key = jax.random.PRNGKey(0)
    configs = [
        # (B, L, C, window_size, dtype)
        (2, 256, 64, 5, jnp.float32),    # single-tile per batch, masked lanes
        (1, 384, 128, 7, jnp.float32),   # B=1 -> split into 2 row tiles (halos)
        (2, 48, 16, 4, jnp.float32),     # even window -> L+1 output rows
        (1, 128, 256, 5, jnp.bfloat16),  # bf16, B=1 -> 2 row tiles, 16-row sub
        (2, 100, 3, 9, jnp.float32),     # tiny C, L not a multiple of 8
    ]
    for (bb, ll, cc, w, dtype) in configs:
        key, sk = jax.random.split(key)
        x = jax.random.normal(sk, (bb, ll, cc), dtype=jnp.float32).astype(dtype)
        y = jax.block_until_ready(window_averaging(x, w))
        y_ref = _reference(np.asarray(x.astype(jnp.float32)), w)
        assert y.shape == y_ref.shape, (y.shape, y_ref.shape)
        tol = 1e-5 if dtype == jnp.float32 else 2e-2
        np.testing.assert_allclose(np.asarray(y).astype(np.float32), y_ref,
                                   rtol=tol, atol=tol)
    print("KERNEL_OK")
</pallas_src>

<mosaic_0001>
module attributes {stable_mosaic.version = 11 : i64} {
  func.func @kernel(%arg0: i32, %arg1: memref<1x256x64xf32, #tpu.memory_space<vmem>>, %arg2: memref<1x256x64xf32, #tpu.memory_space<vmem>>, %arg3: memref<80x64xf32, #tpu.memory_space<vmem>>) attributes {dimension_semantics = [#tpu.dimension_semantics<parallel>], iteration_bounds = array<i64: 2>, scalar_prefetch = 0 : i64, scratch_operands = 1 : i64, tpu.core_type = #tpu.core_type<tc>, window_params = [{transform_indices = @transform_0, window_bounds = array<i64: 1, 256, 64>}, {transform_indices = @transform_1, window_bounds = array<i64: 1, 256, 64>}]} {
    %cst = arith.constant 0.000000e+00 : f32
    %0 = vector.broadcast %cst : f32 to vector<8x64xf32>
    %c0 = arith.constant 0 : index
    %c0_0 = arith.constant 0 : index
    %1 = vector.load %arg3[%c0, %c0_0] : memref<80x64xf32, #tpu.memory_space<vmem>>, vector<8x64xf32>
    tpu.vector_store %arg3[%c0, %c0_0], %0 {strides = array<i32>} : memref<80x64xf32, #tpu.memory_space<vmem>>, vector<8x64xf32>,
    %c0_1 = arith.constant 0 : index
    %c0_2 = arith.constant 0 : index
    %c0_3 = arith.constant 0 : index
    %2 = vector.load %arg1[%c0_1, %c0_2, %c0_3] : memref<1x256x64xf32, #tpu.memory_space<vmem>>, vector<1x72x64xf32>
    %3 = vector.shape_cast %2 : vector<1x72x64xf32> to vector<72x64xf32>
    %c8 = arith.constant 8 : index
    %c0_4 = arith.constant 0 : index
    %4 = vector.load %arg3[%c8, %c0_4] : memref<80x64xf32, #tpu.memory_space<vmem>>, vector<72x64xf32>
    tpu.vector_store %arg3[%c8, %c0_4], %3 {strides = array<i32>} : memref<80x64xf32, #tpu.memory_space<vmem>>, vector<72x64xf32>,
    %c6 = arith.constant 6 : index
    %c0_5 = arith.constant 0 : index
    %5 = vector.load %arg3[%c6, %c0_5] : memref<80x64xf32, #tpu.memory_space<vmem>>, vector<64x64xf32>
    %c7 = arith.constant 7 : index
    %c0_6 = arith.constant 0 : index
    %6 = vector.load %arg3[%c7, %c0_6] : memref<80x64xf32, #tpu.memory_space<vmem>>, vector<64x64xf32>
    %7 = arith.addf %5, %6 : vector<64x64xf32>
    %c8_7 = arith.constant 8 : index
    %c0_8 = arith.constant 0 : index
    %8 = vector.load %arg3[%c8_7, %c0_8] : memref<80x64xf32, #tpu.memory_space<vmem>>, vector<64x64xf32>
    %9 = arith.addf %7, %8 : vector<64x64xf32>
    %c9 = arith.constant 9 : index
    %c0_9 = arith.constant 0 : index
    %10 = vector.load %arg3[%c9, %c0_9] : memref<80x64xf32, #tpu.memory_space<vmem>>, vector<64x64xf32>
    %11 = arith.addf %9, %10 : vector<64x64xf32>
    %c10 = arith.constant 10 : index
    %c0_10 = arith.constant 0 : index
    %12 = vector.load %arg3[%c10, %c0_10] : memref<80x64xf32, #tpu.memory_space<vmem>>, vector<64x64xf32>
    %13 = arith.addf %11, %12 : vector<64x64xf32>
    %cst_11 = arith.constant 2.000000e-01 : f32
    %14 = vector.broadcast %cst_11 : f32 to vector<64x64xf32>
    %15 = arith.mulf %13, %14 : vector<64x64xf32>
    %c0_12 = arith.constant 0 : index
    %c0_13 = arith.constant 0 : index
    %c0_14 = arith.constant 0 : index
    %16 = vector.load %arg2[%c0_12, %c0_13, %c0_14] : memref<1x256x64xf32, #tpu.memory_space<vmem>>, vector<1x64x64xf32>
    %17 = vector.shape_cast %16 : vector<1x64x64xf32> to vector<64x64xf32>
    %18 = vector.shape_cast %15 : vector<64x64xf32> to vector<1x64x64xf32>
    tpu.vector_store %arg2[%c0_12, %c0_13, %c0_14], %18 {strides = array<i32>} : memref<1x256x64xf32, #tpu.memory_space<vmem>>, vector<1x64x64xf32>,
    %c0_15 = arith.constant 0 : index
    %c62 = arith.constant 62 : index
    %c0_16 = arith.constant 0 : index
    %19 = vector.load %arg1[%c0_15, %c62, %c0_16] : memref<1x256x64xf32, #tpu.memory_space<vmem>>, vector<1x64x64xf32>
    %20 = vector.shape_cast %19 : vector<1x64x64xf32> to vector<64x64xf32>
    %c0_17 = arith.constant 0 : index
    %c63 = arith.constant 63 : index
    %c0_18 = arith.constant 0 : index
    %21 = vector.load %arg1[%c0_17, %c63, %c0_18] : memref<1x256x64xf32, #tpu.memory_space<vmem>>, vector<1x64x64xf32>
    %22 = vector.shape_cast %21 : vector<1x64x64xf32> to vector<64x64xf32>
    %23 = arith.addf %20, %22 : vector<64x64xf32>
    %c0_19 = arith.constant 0 : index
    %c64 = arith.constant 64 : index
    %c0_20 = arith.constant 0 : index
    %24 = vector.load %arg1[%c0_19, %c64, %c0_20] : memref<1x256x64xf32, #tpu.memory_space<vmem>>, vector<1x64x64xf32>
    %25 = vector.shape_cast %24 : vector<1x64x64xf32> to vector<64x64xf32>
    %26 = arith.addf %23, %25 : vector<64x64xf32>
    %c0_21 = arith.constant 0 : index
    %c65 = arith.constant 65 : index
    %c0_22 = arith.constant 0 : index
    %27 = vector.load %arg1[%c0_21, %c65, %c0_22] : memref<1x256x64xf32, #tpu.memory_space<vmem>>, vector<1x64x64xf32>
    %28 = vector.shape_cast %27 : vector<1x64x64xf32> to vector<64x64xf32>
    %29 = arith.addf %26, %28 : vector<64x64xf32>
    %c0_23 = arith.constant 0 : index
    %c66 = arith.constant 66 : index
    %c0_24 = arith.constant 0 : index
    %30 = vector.load %arg1[%c0_23, %c66, %c0_24] : memref<1x256x64xf32, #tpu.memory_space<vmem>>, vector<1x64x64xf32>
    %31 = vector.shape_cast %30 : vector<1x64x64xf32> to vector<64x64xf32>
    %32 = arith.addf %29, %31 : vector<64x64xf32>
    %cst_25 = arith.constant 2.000000e-01 : f32
    %33 = vector.broadcast %cst_25 : f32 to vector<64x64xf32>
    %34 = arith.mulf %32, %33 : vector<64x64xf32>
    %c0_26 = arith.constant 0 : index
    %c64_27 = arith.constant 64 : index
    %c0_28 = arith.constant 0 : index
    %35 = vector.load %arg2[%c0_26, %c64_27, %c0_28] : memref<1x256x64xf32, #tpu.memory_space<vmem>>, vector<1x64x64xf32>
    %36 = vector.shape_cast %35 : vector<1x64x64xf32> to vector<64x64xf32>
    %37 = vector.shape_cast %34 : vector<64x64xf32> to vector<1x64x64xf32>
    tpu.vector_store %arg2[%c0_26, %c64_27, %c0_28], %37 {strides = array<i32>} : memref<1x256x64xf32, #tpu.memory_space<vmem>>, vector<1x64x64xf32>,
    %c0_29 = arith.constant 0 : index
    %c126 = arith.constant 126 : index
    %c0_30 = arith.constant 0 : index
    %38 = vector.load %arg1[%c0_29, %c126, %c0_30] : memref<1x256x64xf32, #tpu.memory_space<vmem>>, vector<1x64x64xf32>
    %39 = vector.shape_cast %38 : vector<1x64x64xf32> to vector<64x64xf32>
    %c0_31 = arith.constant 0 : index
    %c127 = arith.constant 127 : index
    %c0_32 = arith.constant 0 : index
    %40 = vector.load %arg1[%c0_31, %c127, %c0_32] : memref<1x256x64xf32, #tpu.memory_space<vmem>>, vector<1x64x64xf32>
    %41 = vector.shape_cast %40 : vector<1x64x64xf32> to vector<64x64xf32>
    %42 = arith.addf %39, %41 : vector<64x64xf32>
    %c0_33 = arith.constant 0 : index
    %c128 = arith.constant 128 : index
    %c0_34 = arith.constant 0 : index
    %43 = vector.load %arg1[%c0_33, %c128, %c0_34] : memref<1x256x64xf32, #tpu.memory_space<vmem>>, vector<1x64x64xf32>
    %44 = vector.shape_cast %43 : vector<1x64x64xf32> to vector<64x64xf32>
    %45 = arith.addf %42, %44 : vector<64x64xf32>
    %c0_35 = arith.constant 0 : index
    %c129 = arith.constant 129 : index
    %c0_36 = arith.constant 0 : index
    %46 = vector.load %arg1[%c0_35, %c129, %c0_36] : memref<1x256x64xf32, #tpu.memory_space<vmem>>, vector<1x64x64xf32>
    %47 = vector.shape_cast %46 : vector<1x64x64xf32> to vector<64x64xf32>
    %48 = arith.addf %45, %47 : vector<64x64xf32>
    %c0_37 = arith.constant 0 : index
    %c130 = arith.constant 130 : index
    %c0_38 = arith.constant 0 : index
    %49 = vector.load %arg1[%c0_37, %c130, %c0_38] : memref<1x256x64xf32, #tpu.memory_space<vmem>>, vector<1x64x64xf32>
    %50 = vector.shape_cast %49 : vector<1x64x64xf32> to vector<64x64xf32>
    %51 = arith.addf %48, %50 : vector<64x64xf32>
    %cst_39 = arith.constant 2.000000e-01 : f32
    %52 = vector.broadcast %cst_39 : f32 to vector<64x64xf32>
    %53 = arith.mulf %51, %52 : vector<64x64xf32>
    %c0_40 = arith.constant 0 : index
    %c128_41 = arith.constant 128 : index
    %c0_42 = arith.constant 0 : index
    %54 = vector.load %arg2[%c0_40, %c128_41, %c0_42] : memref<1x256x64xf32, #tpu.memory_space<vmem>>, vector<1x64x64xf32>
    %55 = vector.shape_cast %54 : vector<1x64x64xf32> to vector<64x64xf32>
    %56 = vector.shape_cast %53 : vector<64x64xf32> to vector<1x64x64xf32>
    tpu.vector_store %arg2[%c0_40, %c128_41, %c0_42], %56 {strides = array<i32>} : memref<1x256x64xf32, #tpu.memory_space<vmem>>, vector<1x64x64xf32>,
    %cst_43 = arith.constant 0.000000e+00 : f32
    %57 = vector.broadcast %cst_43 : f32 to vector<8x64xf32>
    %c72 = arith.constant 72 : index
    %c0_44 = arith.constant 0 : index
    %58 = vector.load %arg3[%c72, %c0_44] : memref<80x64xf32, #tpu.memory_space<vmem>>, vector<8x64xf32>
    tpu.vector_store %arg3[%c72, %c0_44], %57 {strides = array<i32>} : memref<80x64xf32, #tpu.memory_space<vmem>>, vector<8x64xf32>,
    %c0_45 = arith.constant 0 : index
    %c184 = arith.constant 184 : index
    %c0_46 = arith.constant 0 : index
    %59 = vector.load %arg1[%c0_45, %c184, %c0_46] : memref<1x256x64xf32, #tpu.memory_space<vmem>>, vector<1x72x64xf32>
    %60 = vector.shape_cast %59 : vector<1x72x64xf32> to vector<72x64xf32>
    %c0_47 = arith.constant 0 : index
    %c0_48 = arith.constant 0 : index
    %61 = vector.load %arg3[%c0_47, %c0_48] : memref<80x64xf32, #tpu.memory_space<vmem>>, vector<72x64xf32>
    tpu.vector_store %arg3[%c0_47, %c0_48], %60 {strides = array<i32>} : memref<80x64xf32, #tpu.memory_space<vmem>>, vector<72x64xf32>,
    %c6_49 = arith.constant 6 : index
    %c0_50 = arith.constant 0 : index
    %62 = vector.load %arg3[%c6_49, %c0_50] : memref<80x64xf32, #tpu.memory_space<vmem>>, vector<64x64xf32>
    %c7_51 = arith.constant 7 : index
    %c0_52 = arith.constant 0 : index
    %63 = vector.load %arg3[%c7_51, %c0_52] : memref<80x64xf32, #tpu.memory_space<vmem>>, vector<64x64xf32>
    %64 = arith.addf %62, %63 : vector<64x64xf32>
    %c8_53 = arith.constant 8 : index
    %c0_54 = arith.constant 0 : index
    %65 = vector.load %arg3[%c8_53, %c0_54] : memref<80x64xf32, #tpu.memory_space<vmem>>, vector<64x64xf32>
    %66 = arith.addf %64, %65 : vector<64x64xf32>
    %c9_55 = arith.constant 9 : index
    %c0_56 = arith.constant 0 : index
    %67 = vector.load %arg3[%c9_55, %c0_56] : memref<80x64xf32, #tpu.memory_space<vmem>>, vector<64x64xf32>
    %68 = arith.addf %66, %67 : vector<64x64xf32>
    %c10_57 = arith.constant 10 : index
    %c0_58 = arith.constant 0 : index
    %69 = vector.load %arg3[%c10_57, %c0_58] : memref<80x64xf32, #tpu.memory_space<vmem>>, vector<64x64xf32>
    %70 = arith.addf %68, %69 : vector<64x64xf32>
    %cst_59 = arith.constant 2.000000e-01 : f32
    %71 = vector.broadcast %cst_59 : f32 to vector<64x64xf32>
    %72 = arith.mulf %70, %71 : vector<64x64xf32>
    %c0_60 = arith.constant 0 : index
    %c192 = arith.constant 192 : index
    %c0_61 = arith.constant 0 : index
    %73 = vector.load %arg2[%c0_60, %c192, %c0_61] : memref<1x256x64xf32, #tpu.memory_space<vmem>>, vector<1x64x64xf32>
    %74 = vector.shape_cast %73 : vector<1x64x64xf32> to vector<64x64xf32>
    %75 = vector.shape_cast %72 : vector<64x64xf32> to vector<1x64x64xf32>
    tpu.vector_store %arg2[%c0_60, %c192, %c0_61], %75 {strides = array<i32>} : memref<1x256x64xf32, #tpu.memory_space<vmem>>, vector<1x64x64xf32>,
    return
  }
  func.func @transform_0(%arg0: i32) -> (i32, i32, i32) {
    %c0_i32 = arith.constant 0 : i32
    %c0_i32_0 = arith.constant 0 : i32
    %c0_i32_1 = arith.constant 0 : i32
    return %arg0, %c0_i32, %c0_i32_0 : i32, i32, i32
  }
  func.func @transform_1(%arg0: i32) -> (i32, i32, i32) {
    %c0_i32 = arith.constant 0 : i32
    %c0_i32_0 = arith.constant 0 : i32
    %c0_i32_1 = arith.constant 0 : i32
    return %arg0, %c0_i32, %c0_i32_0 : i32, i32, i32
  }
}

</mosaic_0001>

<llo_original>
// kernel: tpu_custom_call.1
$region0: #{tpu_custom_call.1}
  #allocation0 [shape = 'u32[]', space=smem, size = 0x4, offset = 0x4, fixed_abs, tag = 'smem constant byte address 0x4 - core index']
  #allocation1 [shape = 'u32[144,128]{1,0:T(1,128)}', space=vmem, size = 0x12000, scoped, tag = 'internal scratch']
  #allocation2 [shape = 'f32[80,64]{1,0:T(8,128)}', space=vmem, size = 0xa000, scoped, tag = 'scratch operand']
  %s0 = inlined_call_operand.vmem [shape: f32[2,256,64], index: 0, kind: input, shape index: {}]
  %s1 = inlined_call_operand.vmem [shape: f32[2,256,64], index: 1, kind: output, shape index: {}]
  %s2 = sld [smem:[#allocation0]]
  $region37: #{tpu_custom_call.1} parent=0
    _
  %s4 = ssub.s32 1, %s2
  %s5 = scalar_select 0, %s4, %s2
  loop: start=0, step=1, limit=4
  $region2: #{tpu_custom_call.1} parent=0 // loop_pre_header
    _
  $region3: #{tpu_custom_call.1} parent=0 // loop_header
    %s7 = sphi 0, %s11
    %p8 = scmp.ge.s32.totalorder %s7, 4
    %s17 = sphi 0, %s19
    %s20 = sphi 0, %s17
    %s21 = sphi 0, %s20
    %s37 = sphi 0, %s21
    %s43 = sphi 0, %s45
    %s46 = sphi 0, %s43
    %s47 = sphi 0, %s46
    %s63 = sphi 0, %s47
  $region4: #{tpu_custom_call.1} parent=0 // loop_header_branch
    %10 = sbr.rel (%p8) target = $region8
  $region5: #{tpu_custom_call.1} parent=0 // loop_body
    %s12 = ssub.s32 %s7, 1
    %s13 = ssub.s32 %s7, 2
    %s14 = sadd.s32 %s7, 1
    %s15 = ssub.s32 %s7, %s14
    %p16 = scmp.eq.s32.totalorder %s15, 0
    %s18 = sadd.s32 %s17, 1
    %s19 = scalar_select %p16, %s17, %s18
    %p22 = pneg %p16
    %p23 = scmp.eq.s32.totalorder %s7, 1
    %p24 = por %p22, %p23
    %p25 = scmp.ne.s32.totalorder %s17, %s20
    %p26 = scmp.eq.s32.totalorder %s7, 0
    %p27 = por %p25, %p26
    %p28 = scmp.ne.s32.totalorder %s17, %s20
    %p29 = scmp.eq.s32.totalorder %s12, 1
    %p30 = por %p28, %p29
    %p31 = scmp.ne.s32.totalorder %s20, %s21
    %p32 = scmp.eq.s32.totalorder %s12, 0
    %p33 = por %p31, %p32
    %p34 = scmp.ne.s32.totalorder %s20, %s21
    %p35 = scmp.eq.s32.totalorder %s13, 1
    %p36 = por %p34, %p35
    %p38 = scmp.ne.s32.totalorder %s21, %s37
    %p39 = scmp.eq.s32.totalorder %s13, 0
    %p40 = por %p38, %p39
    %s41 = ssub.s32 %s7, %s14
    %p42 = scmp.eq.s32.totalorder %s41, 0
    %s44 = sadd.s32 %s43, 1
    %s45 = scalar_select %p42, %s43, %s44
    %p48 = pneg %p42
    %p49 = scmp.eq.s32.totalorder %s7, 1
    %p50 = por %p48, %p49
    %p51 = scmp.ne.s32.totalorder %s43, %s46
    %p52 = scmp.eq.s32.totalorder %s7, 0
    %p53 = por %p51, %p52
    %p54 = scmp.ne.s32.totalorder %s43, %s46
    %p55 = scmp.eq.s32.totalorder %s12, 1
    %p56 = por %p54, %p55
    %p57 = scmp.ne.s32.totalorder %s46, %s47
    %p58 = scmp.eq.s32.totalorder %s12, 0
    %p59 = por %p57, %p58
    %p60 = scmp.ne.s32.totalorder %s46, %s47
    %p61 = scmp.eq.s32.totalorder %s13, 1
    %p62 = por %p60, %p61
    %p64 = scmp.ne.s32.totalorder %s47, %s63
    %p65 = scmp.eq.s32.totalorder %s13, 0
    %p66 = por %p64, %p65
    %p67 = scmp.le.s32.totalorder 1, %s7
    %p68 = scmp.lt.s32.totalorder %s7, 3
    %p69 = pnand %p67, %p68
    %p70 = pneg %p69
    // Predicated region
    $region9: #{tpu_custom_call.1} parent=5 // pred_check
      _
    $region10: #{tpu_custom_call.1} parent=5 // pred_check_branch
      %72 = sbr.rel (%p69) target = $region12
    $region11: #{tpu_custom_call.1} parent=5 // pred_region
      %s73 = ssub.s32 %s7, 1
    $region12: #{tpu_custom_call.1} parent=5 // pred_fallthru
      _
    %p74 = scmp.lt.s32.totalorder %s7, 2
    // Predicated region
    $region13: #{tpu_custom_call.1} parent=5 // pred_check
      %p75 = pneg %p74
    $region14: #{tpu_custom_call.1} parent=5 // pred_check_branch
      %77 = sbr.rel (%p75) target = $region16
    $region15: #{tpu_custom_call.1} parent=5 // pred_region
      // Predicated region
      $region17: #{tpu_custom_call.1} parent=15 // pred_check
        %p78 = pneg %p27
      $region18: #{tpu_custom_call.1} parent=15 // pred_check_branch
        %80 = sbr.rel (%p78) target = $region20
      $region19: #{tpu_custom_call.1} parent=15 // pred_region
        %p81 = scmp.lt.s32.totalorder %s7, 1
        %s82 = scalar_select %p81, %s7, 1
        %s83 = smul.addr %s82, 32
        %s84 = smul.addr %s83, 8
        %s85 = scalar_lea.vmem %s0, %s84
      $region20: #{tpu_custom_call.1} parent=15 // pred_fallthru
        _
    $region16: #{tpu_custom_call.1} parent=5 // pred_fallthru
      _
    %p86 = scmp.le.s32.totalorder 1, %s7
    %p87 = scmp.lt.s32.totalorder %s7, 3
    %p88 = pnand %p86, %p87
    %p89 = pneg %p88
    // Predicated region
    $region21: #{tpu_custom_call.1} parent=5 // pred_check
      _
    $region22: #{tpu_custom_call.1} parent=5 // pred_check_branch
      %91 = sbr.rel (%p88) target = $region24
    $region23: #{tpu_custom_call.1} parent=5 // pred_region
      %s92 = ssub.s32 %s7, 1
      %p93 = scmp.lt.s32.totalorder %s12, 1
      %s94 = scalar_select %p93, %s12, 1
      %s95 = smul.addr %s94, 32
      %s96 = smul.addr %s95, 8
      %s97 = scalar_lea.vmem %s0, %s96
      %p98 = pneg %p33
      %p99 = pneg %p30
      %p100 = pneg %p59
      %p101 = pneg %p56
      %p102 = scmp.lt.s32.totalorder %s12, 1
      %s103 = scalar_select %p102, %s12, 1
      %s104 = smul.addr %s103, 32
      %s105 = smul.addr %s104, 8
      %s106 = scalar_lea.vmem %s1, %s105
      %p107 = scmp.lt.s32.totalorder %s12, 1
      %s108 = scalar_select %p107, %s12, 1
      %s109 = smul.addr %s108, 32
      %s110 = smul.addr %s109, 8
      %s111 = scalar_lea.vmem %s0, %s110
      %p112 = scmp.lt.s32.totalorder %s12, 1
      %s113 = scalar_select %p112, %s12, 1
      %s114 = smul.addr %s113, 32
      %s115 = smul.addr %s114, 8
      %s116 = scalar_lea.vmem %s1, %s115
      %vm117 = vcmask 523264
      %118 = vst.msk [vmem:[#allocation2] sm:$0xff] %vm117, 0.0
      %v119 = vld [vmem:[%s111] sm:$0xff]
      %v120 = vld [vmem:[%s111 + $0x8] sm:$0xff]
      %v121 = vld [vmem:[%s111 + $0x10] sm:$0xff]
      %v122 = vld [vmem:[%s111 + $0x18] sm:$0xff]
      %v123 = vld [vmem:[%s111 + $0x20] sm:$0xff]
      %v124 = vld [vmem:[%s111 + $0x28] sm:$0xff]
      %v125 = vld [vmem:[%s111 + $0x30] sm:$0xff]
      %v126 = vld [vmem:[%s111 + $0x38] sm:$0xff]
      %v127 = vld [vmem:[%s111 + $0x40] sm:$0xff]
      %128 = vst.msk [vmem:[#allocation2 + $0x8] sm:$0xff] %vm117, %v119
      %129 = vst.msk [vmem:[#allocation2 + $0x10] sm:$0xff] %vm117, %v120
      %130 = vst.msk [vmem:[#allocation2 + $0x18] sm:$0xff] %vm117, %v121
      %131 = vst.msk [vmem:[#allocation2 + $0x20] sm:$0xff] %vm117, %v122
      %132 = vst.msk [vmem:[#allocation2 + $0x28] sm:$0xff] %vm117, %v123
      %133 = vst.msk [vmem:[#allocation2 + $0x30] sm:$0xff] %vm117, %v124
      %134 = vst.msk [vmem:[#allocation2 + $0x38] sm:$0xff] %vm117, %v125
      %135 = vst.msk [vmem:[#allocation2 + $0x40] sm:$0xff] %vm117, %v126
      %136 = vst.msk [vmem:[#allocation2 + $0x48] sm:$0xff] %vm117, %v127
      %v137 = vld [vmem:[#allocation2 + $0x6] sm:$0xff]
      %v138 = vld [vmem:[#allocation2 + $0xe] sm:$0xff]
      %v139 = vld [vmem:[#allocation2 + $0x16] sm:$0xff]
      %v140 = vld [vmem:[#allocation2 + $0x1e] sm:$0xff]
      %v141 = vld [vmem:[#allocation2 + $0x26] sm:$0xff]
      %v142 = vld [vmem:[#allocation2 + $0x2e] sm:$0xff]
      %v143 = vld [vmem:[#allocation2 + $0x36] sm:$0xff]
      %v144 = vld [vmem:[#allocation2 + $0x3e] sm:$0xff]
      %v145 = vld [vmem:[#allocation2 + $0x7] sm:$0xff]
      %v146 = vld [vmem:[#allocation2 + $0xf] sm:$0xff]
      %v147 = vld [vmem:[#allocation2 + $0x17] sm:$0xff]
      %v148 = vld [vmem:[#allocation2 + $0x1f] sm:$0xff]
      %v149 = vld [vmem:[#allocation2 + $0x27] sm:$0xff]
      %v150 = vld [vmem:[#allocation2 + $0x2f] sm:$0xff]
      %v151 = vld [vmem:[#allocation2 + $0x37] sm:$0xff]
      %v152 = vld [vmem:[#allocation2 + $0x3f] sm:$0xff]
      %v153 = vadd.f32 %v137, %v145
      %v154 = vadd.f32 %v138, %v146
      %v155 = vadd.f32 %v139, %v147
      %v156 = vadd.f32 %v140, %v148
      %v157 = vadd.f32 %v141, %v149
      %v158 = vadd.f32 %v142, %v150
      %v159 = vadd.f32 %v143, %v151
      %v160 = vadd.f32 %v144, %v152
      %v161 = vld [vmem:[#allocation2 + $0x8] sm:$0xff]
      %v162 = vld [vmem:[#allocation2 + $0x10] sm:$0xff]
      %v163 = vld [vmem:[#allocation2 + $0x18] sm:$0xff]
      %v164 = vld [vmem:[#allocation2 + $0x20] sm:$0xff]
      %v165 = vld [vmem:[#allocation2 + $0x28] sm:$0xff]
      %v166 = vld [vmem:[#allocation2 + $0x30] sm:$0xff]
      %v167 = vld [vmem:[#allocation2 + $0x38] sm:$0xff]
      %v168 = vld [vmem:[#allocation2 + $0x40] sm:$0xff]
      %v169 = vadd.f32 %v153, %v161
      %v170 = vadd.f32 %v154, %v162
      %v171 = vadd.f32 %v155, %v163
      %v172 = vadd.f32 %v156, %v164
      %v173 = vadd.f32 %v157, %v165
      %v174 = vadd.f32 %v158, %v166
      %v175 = vadd.f32 %v159, %v167
      %v176 = vadd.f32 %v160, %v168
      %v177 = vld [vmem:[#allocation2 + $0x9] sm:$0xff]
      %v178 = vld [vmem:[#allocation2 + $0x11] sm:$0xff]
      %v179 = vld [vmem:[#allocation2 + $0x19] sm:$0xff]
      %v180 = vld [vmem:[#allocation2 + $0x21] sm:$0xff]
      %v181 = vld [vmem:[#allocation2 + $0x29] sm:$0xff]
      %v182 = vld [vmem:[#allocation2 + $0x31] sm:$0xff]
      %v183 = vld [vmem:[#allocation2 + $0x39] sm:$0xff]
      %v184 = vld [vmem:[#allocation2 + $0x41] sm:$0xff]
      %v185 = vadd.f32 %v169, %v177
      %v186 = vadd.f32 %v170, %v178
      %v187 = vadd.f32 %v171, %v179
      %v188 = vadd.f32 %v172, %v180
      %v189 = vadd.f32 %v173, %v181
      %v190 = vadd.f32 %v174, %v182
      %v191 = vadd.f32 %v175, %v183
      %v192 = vadd.f32 %v176, %v184
      %v193 = vld [vmem:[#allocation2 + $0xa] sm:$0xff]
      %v194 = vld [vmem:[#allocation2 + $0x12] sm:$0xff]
      %v195 = vld [vmem:[#allocation2 + $0x1a] sm:$0xff]
      %v196 = vld [vmem:[#allocation2 + $0x22] sm:$0xff]
      %v197 = vld [vmem:[#allocation2 + $0x2a] sm:$0xff]
      %v198 = vld [vmem:[#allocation2 + $0x32] sm:$0xff]
      %v199 = vld [vmem:[#allocation2 + $0x3a] sm:$0xff]
      %v200 = vld [vmem:[#allocation2 + $0x42] sm:$0xff]
      %v201 = vadd.f32 %v185, %v193
      %v202 = vadd.f32 %v186, %v194
      %v203 = vadd.f32 %v187, %v195
      %v204 = vadd.f32 %v188, %v196
      %v205 = vadd.f32 %v189, %v197
      %v206 = vadd.f32 %v190, %v198
      %v207 = vadd.f32 %v191, %v199
      %v208 = vadd.f32 %v192, %v200
      %v209 = vmul.f32 %v201, 0.2
      %v210 = vmul.f32 %v202, 0.2
      %v211 = vmul.f32 %v203, 0.2
      %v212 = vmul.f32 %v204, 0.2
      %v213 = vmul.f32 %v205, 0.2
      %v214 = vmul.f32 %v206, 0.2
      %v215 = vmul.f32 %v207, 0.2
      %v216 = vmul.f32 %v208, 0.2
      %217 = vst.msk [vmem:[%s116] sm:$0xff] %vm117, %v209
      %218 = vst.msk [vmem:[%s116 + $0x8] sm:$0xff] %vm117, %v210
      %219 = vst.msk [vmem:[%s116 + $0x10] sm:$0xff] %vm117, %v211
      %220 = vst.msk [vmem:[%s116 + $0x18] sm:$0xff] %vm117, %v212
      %221 = vst.msk [vmem:[%s116 + $0x20] sm:$0xff] %vm117, %v213
      %222 = vst.msk [vmem:[%s116 + $0x28] sm:$0xff] %vm117, %v214
      %223 = vst.msk [vmem:[%s116 + $0x30] sm:$0xff] %vm117, %v215
      %224 = vst.msk [vmem:[%s116 + $0x38] sm:$0xff] %vm117, %v216
      %v225 = vld [vmem:[%s111 + $0x3e] sm:$0xff]
      %v226 = vld [vmem:[%s111 + $0x46] sm:$0xff]
      %v227 = vld [vmem:[%s111 + $0x4e] sm:$0xff]
      %v228 = vld [vmem:[%s111 + $0x56] sm:$0xff]
      %v229 = vld [vmem:[%s111 + $0x5e] sm:$0xff]
      %v230 = vld [vmem:[%s111 + $0x66] sm:$0xff]
      %v231 = vld [vmem:[%s111 + $0x6e] sm:$0xff]
      %v232 = vld [vmem:[%s111 + $0x76] sm:$0xff]
      %v233 = vld [vmem:[%s111 + $0x3f] sm:$0xff]
      %v234 = vld [vmem:[%s111 + $0x47] sm:$0xff]
      %v235 = vld [vmem:[%s111 + $0x4f] sm:$0xff]
      %v236 = vld [vmem:[%s111 + $0x57] sm:$0xff]
      %v237 = vld [vmem:[%s111 + $0x5f] sm:$0xff]
      %v238 = vld [vmem:[%s111 + $0x67] sm:$0xff]
      %v239 = vld [vmem:[%s111 + $0x6f] sm:$0xff]
      %v240 = vld [vmem:[%s111 + $0x77] sm:$0xff]
      %v241 = vadd.f32 %v225, %v233
      %v242 = vadd.f32 %v226, %v234
      %v243 = vadd.f32 %v227, %v235
      %v244 = vadd.f32 %v228, %v236
      %v245 = vadd.f32 %v229, %v237
      %v246 = vadd.f32 %v230, %v238
      %v247 = vadd.f32 %v231, %v239
      %v248 = vadd.f32 %v232, %v240
      %v249 = vld [vmem:[%s111 + $0x40] sm:$0xff]
      %v250 = vld [vmem:[%s111 + $0x48] sm:$0xff]
      %v251 = vld [vmem:[%s111 + $0x50] sm:$0xff]
      %v252 = vld [vmem:[%s111 + $0x58] sm:$0xff]
      %v253 = vld [vmem:[%s111 + $0x60] sm:$0xff]
      %v254 = vld [vmem:[%s111 + $0x68] sm:$0xff]
      %v255 = vld [vmem:[%s111 + $0x70] sm:$0xff]
      %v256 = vld [vmem:[%s111 + $0x78] sm:$0xff]
      %v257 = vadd.f32 %v241, %v249
      %v258 = vadd.f32 %v242, %v250
      %v259 = vadd.f32 %v243, %v251
      %v260 = vadd.f32 %v244, %v252
      %v261 = vadd.f32 %v245, %v253
      %v262 = vadd.f32 %v246, %v254
      %v263 = vadd.f32 %v247, %v255
      %v264 = vadd.f32 %v248, %v256
      %v265 = vld [vmem:[%s111 + $0x41] sm:$0xff]
      %v266 = vld [vmem:[%s111 + $0x49] sm:$0xff]
      %v267 = vld [vmem:[%s111 + $0x51] sm:$0xff]
      %v268 = vld [vmem:[%s111 + $0x59] sm:$0xff]
      %v269 = vld [vmem:[%s111 + $0x61] sm:$0xff]
      %v270 = vld [vmem:[%s111 + $0x69] sm:$0xff]
      %v271 = vld [vmem:[%s111 + $0x71] sm:$0xff]
      %v272 = vld [vmem:[%s111 + $0x79] sm:$0xff]
      %v273 = vadd.f32 %v257, %v265
      %v274 = vadd.f32 %v258, %v266
      %v275 = vadd.f32 %v259, %v267
      %v276 = vadd.f32 %v260, %v268
      %v277 = vadd.f32 %v261, %v269
      %v278 = vadd.f32 %v262, %v270
      %v279 = vadd.f32 %v263, %v271
      %v280 = vadd.f32 %v264, %v272
      %v281 = vld [vmem:[%s111 + $0x42] sm:$0xff]
      %v282 = vld [vmem:[%s111 + $0x4a] sm:$0xff]
      %v283 = vld [vmem:[%s111 + $0x52] sm:$0xff]
      %v284 = vld [vmem:[%s111 + $0x5a] sm:$0xff]
      %v285 = vld [vmem:[%s111 + $0x62] sm:$0xff]
      %v286 = vld [vmem:[%s111 + $0x6a] sm:$0xff]
      %v287 = vld [vmem:[%s111 + $0x72] sm:$0xff]
      %v288 = vld [vmem:[%s111 + $0x7a] sm:$0xff]
      %v289 = vadd.f32 %v273, %v281
      %v290 = vadd.f32 %v274, %v282
      %v291 = vadd.f32 %v275, %v283
      %v292 = vadd.f32 %v276, %v284
      %v293 = vadd.f32 %v277, %v285
      %v294 = vadd.f32 %v278, %v286
      %v295 = vadd.f32 %v279, %v287
      %v296 = vadd.f32 %v280, %v288
      %v297 = vmul.f32 %v289, 0.2
      %v298 = vmul.f32 %v290, 0.2
      %v299 = vmul.f32 %v291, 0.2
      %v300 = vmul.f32 %v292, 0.2
      %v301 = vmul.f32 %v293, 0.2
      %v302 = vmul.f32 %v294, 0.2
      %v303 = vmul.f32 %v295, 0.2
      %v304 = vmul.f32 %v296, 0.2
      %305 = vst.msk [vmem:[%s116 + $0x40] sm:$0xff] %vm117, %v297
      %306 = vst.msk [vmem:[%s116 + $0x48] sm:$0xff] %vm117, %v298
      %307 = vst.msk [vmem:[%s116 + $0x50] sm:$0xff] %vm117, %v299
      %308 = vst.msk [vmem:[%s116 + $0x58] sm:$0xff] %vm117, %v300
      %309 = vst.msk [vmem:[%s116 + $0x60] sm:$0xff] %vm117, %v301
      %310 = vst.msk [vmem:[%s116 + $0x68] sm:$0xff] %vm117, %v302
      %311 = vst.msk [vmem:[%s116 + $0x70] sm:$0xff] %vm117, %v303
      %312 = vst.msk [vmem:[%s116 + $0x78] sm:$0xff] %vm117, %v304
      %v313 = vld [vmem:[%s111 + $0x7e] sm:$0xff]
      %v314 = vld [vmem:[%s111 + $0x86] sm:$0xff]
      %v315 = vld [vmem:[%s111 + $0x8e] sm:$0xff]
      %v316 = vld [vmem:[%s111 + $0x96] sm:$0xff]
      %v317 = vld [vmem:[%s111 + $0x9e] sm:$0xff]
      %v318 = vld [vmem:[%s111 + $0xa6] sm:$0xff]
      %v319 = vld [vmem:[%s111 + $0xae] sm:$0xff]
      %v320 = vld [vmem:[%s111 + $0xb6] sm:$0xff]
      %v321 = vld [vmem:[%s111 + $0x7f] sm:$0xff]
      %v322 = vld [vmem:[%s111 + $0x87] sm:$0xff]
      %v323 = vld [vmem:[%s111 + $0x8f] sm:$0xff]
      %v324 = vld [vmem:[%s111 + $0x97] sm:$0xff]
      %v325 = vld [vmem:[%s111 + $0x9f] sm:$0xff]
      %v326 = vld [vmem:[%s111 + $0xa7] sm:$0xff]
      %v327 = vld [vmem:[%s111 + $0xaf] sm:$0xff]
      %v328 = vld [vmem:[%s111 + $0xb7] sm:$0xff]
      %v329 = vadd.f32 %v313, %v321
      %v330 = vadd.f32 %v314, %v322
      %v331 = vadd.f32 %v315, %v323
      %v332 = vadd.f32 %v316, %v324
      %v333 = vadd.f32 %v317, %v325
      %v334 = vadd.f32 %v318, %v326
      %v335 = vadd.f32 %v319, %v327
      %v336 = vadd.f32 %v320, %v328
      %v337 = vld [vmem:[%s111 + $0x80] sm:$0xff]
      %v338 = vld [vmem:[%s111 + $0x88] sm:$0xff]
      %v339 = vld [vmem:[%s111 + $0x90] sm:$0xff]
      %v340 = vld [vmem:[%s111 + $0x98] sm:$0xff]
      %v341 = vld [vmem:[%s111 + $0xa0] sm:$0xff]
      %v342 = vld [vmem:[%s111 + $0xa8] sm:$0xff]
      %v343 = vld [vmem:[%s111 + $0xb0] sm:$0xff]
      %v344 = vld [vmem:[%s111 + $0xb8] sm:$0xff]
      %v345 = vadd.f32 %v329, %v337
      %v346 = vadd.f32 %v330, %v338
      %v347 = vadd.f32 %v331, %v339
      %v348 = vadd.f32 %v332, %v340
      %v349 = vadd.f32 %v333, %v341
      %v350 = vadd.f32 %v334, %v342
      %v351 = vadd.f32 %v335, %v343
      %v352 = vadd.f32 %v336, %v344
      %v353 = vld [vmem:[%s111 + $0x81] sm:$0xff]
      %v354 = vld [vmem:[%s111 + $0x89] sm:$0xff]
      %v355 = vld [vmem:[%s111 + $0x91] sm:$0xff]
      %v356 = vld [vmem:[%s111 + $0x99] sm:$0xff]
      %v357 = vld [vmem:[%s111 + $0xa1] sm:$0xff]
      %v358 = vld [vmem:[%s111 + $0xa9] sm:$0xff]
      %v359 = vld [vmem:[%s111 + $0xb1] sm:$0xff]
      %v360 = vld [vmem:[%s111 + $0xb9] sm:$0xff]
      %v361 = vadd.f32 %v345, %v353
      %v362 = vadd.f32 %v346, %v354
      %v363 = vadd.f32 %v347, %v355
      %v364 = vadd.f32 %v348, %v356
      %v365 = vadd.f32 %v349, %v357
      %v366 = vadd.f32 %v350, %v358
      %v367 = vadd.f32 %v351, %v359
      %v368 = vadd.f32 %v352, %v360
      %v369 = vld [vmem:[%s111 + $0x82] sm:$0xff]
      %v370 = vld [vmem:[%s111 + $0x8a] sm:$0xff]
      %v371 = vld [vmem:[%s111 + $0x92] sm:$0xff]
      %v372 = vld [vmem:[%s111 + $0x9a] sm:$0xff]
      %v373 = vld [vmem:[%s111 + $0xa2] sm:$0xff]
      %v374 = vld [vmem:[%s111 + $0xaa] sm:$0xff]
      %v375 = vld [vmem:[%s111 + $0xb2] sm:$0xff]
      %v376 = vld [vmem:[%s111 + $0xba] sm:$0xff]
      %v377 = vadd.f32 %v361, %v369
      %v378 = vadd.f32 %v362, %v370
      %v379 = vadd.f32 %v363, %v371
      %v380 = vadd.f32 %v364, %v372
      %v381 = vadd.f32 %v365, %v373
      %v382 = vadd.f32 %v366, %v374
      %v383 = vadd.f32 %v367, %v375
      %v384 = vadd.f32 %v368, %v376
      %v385 = vmul.f32 %v377, 0.2
      %v386 = vmul.f32 %v378, 0.2
      %v387 = vmul.f32 %v379, 0.2
      %v388 = vmul.f32 %v380, 0.2
      %v389 = vmul.f32 %v381, 0.2
      %v390 = vmul.f32 %v382, 0.2
      %v391 = vmul.f32 %v383, 0.2
      %v392 = vmul.f32 %v384, 0.2
      %393 = vst.msk [vmem:[%s116 + $0x80] sm:$0xff] %vm117, %v385
      %394 = vst.msk [vmem:[%s116 + $0x88] sm:$0xff] %vm117, %v386
      %395 = vst.msk [vmem:[%s116 + $0x90] sm:$0xff] %vm117, %v387
      %396 = vst.msk [vmem:[%s116 + $0x98] sm:$0xff] %vm117, %v388
      %397 = vst.msk [vmem:[%s116 + $0xa0] sm:$0xff] %vm117, %v389
      %398 = vst.msk [vmem:[%s116 + $0xa8] sm:$0xff] %vm117, %v390
      %399 = vst.msk [vmem:[%s116 + $0xb0] sm:$0xff] %vm117, %v391
      %400 = vst.msk [vmem:[%s116 + $0xb8] sm:$0xff] %vm117, %v392
      %401 = vst.msk [vmem:[#allocation2 + $0x48] sm:$0xff] %vm117, 0.0
      %v402 = vld [vmem:[%s111 + $0xb8] sm:$0xff]
      %v403 = vld [vmem:[%s111 + $0xc0] sm:$0xff]
      %v404 = vld [vmem:[%s111 + $0xc8] sm:$0xff]
      %v405 = vld [vmem:[%s111 + $0xd0] sm:$0xff]
      %v406 = vld [vmem:[%s111 + $0xd8] sm:$0xff]
      %v407 = vld [vmem:[%s111 + $0xe0] sm:$0xff]
      %v408 = vld [vmem:[%s111 + $0xe8] sm:$0xff]
      %v409 = vld [vmem:[%s111 + $0xf0] sm:$0xff]
      %v410 = vld [vmem:[%s111 + $0xf8] sm:$0xff]
      %411 = vst.msk [vmem:[#allocation2] sm:$0xff] %vm117, %v402
      %412 = vst.msk [vmem:[#allocation2 + $0x8] sm:$0xff] %vm117, %v403
      %413 = vst.msk [vmem:[#allocation2 + $0x10] sm:$0xff] %vm117, %v404
      %414 = vst.msk [vmem:[#allocation2 + $0x18] sm:$0xff] %vm117, %v405
      %415 = vst.msk [vmem:[#allocation2 + $0x20] sm:$0xff] %vm117, %v406
      %416 = vst.msk [vmem:[#allocation2 + $0x28] sm:$0xff] %vm117, %v407
      %417 = vst.msk [vmem:[#allocation2 + $0x30] sm:$0xff] %vm117, %v408
      %418 = vst.msk [vmem:[#allocation2 + $0x38] sm:$0xff] %vm117, %v409
      %419 = vst.msk [vmem:[#allocation2 + $0x40] sm:$0xff] %vm117, %v410
      %v420 = vld [vmem:[#allocation2 + $0x6] sm:$0xff]
      %v421 = vld [vmem:[#allocation2 + $0xe] sm:$0xff]
      %v422 = vld [vmem:[#allocation2 + $0x16] sm:$0xff]
      %v423 = vld [vmem:[#allocation2 + $0x1e] sm:$0xff]
      %v424 = vld [vmem:[#allocation2 + $0x26] sm:$0xff]
      %v425 = vld [vmem:[#allocation2 + $0x2e] sm:$0xff]
      %v426 = vld [vmem:[#allocation2 + $0x36] sm:$0xff]
      %v427 = vld [vmem:[#allocation2 + $0x3e] sm:$0xff]
      %v428 = vld [vmem:[#allocation2 + $0x7] sm:$0xff]
      %v429 = vld [vmem:[#allocation2 + $0xf] sm:$0xff]
      %v430 = vld [vmem:[#allocation2 + $0x17] sm:$0xff]
      %v431 = vld [vmem:[#allocation2 + $0x1f] sm:$0xff]
      %v432 = vld [vmem:[#allocation2 + $0x27] sm:$0xff]
      %v433 = vld [vmem:[#allocation2 + $0x2f] sm:$0xff]
      %v434 = vld [vmem:[#allocation2 + $0x37] sm:$0xff]
      %v435 = vld [vmem:[#allocation2 + $0x3f] sm:$0xff]
      %v436 = vadd.f32 %v420, %v428
      %v437 = vadd.f32 %v421, %v429
      %v438 = vadd.f32 %v422, %v430
      %v439 = vadd.f32 %v423, %v431
      %v440 = vadd.f32 %v424, %v432
      %v441 = vadd.f32 %v425, %v433
      %v442 = vadd.f32 %v426, %v434
      %v443 = vadd.f32 %v427, %v435
      %v444 = vld [vmem:[#allocation2 + $0x8] sm:$0xff]
      %v445 = vld [vmem:[#allocation2 + $0x10] sm:$0xff]
      %v446 = vld [vmem:[#allocation2 + $0x18] sm:$0xff]
      %v447 = vld [vmem:[#allocation2 + $0x20] sm:$0xff]
      %v448 = vld [vmem:[#allocation2 + $0x28] sm:$0xff]
      %v449 = vld [vmem:[#allocation2 + $0x30] sm:$0xff]
      %v450 = vld [vmem:[#allocation2 + $0x38] sm:$0xff]
      %v451 = vld [vmem:[#allocation2 + $0x40] sm:$0xff]
      %v452 = vadd.f32 %v436, %v444
      %v453 = vadd.f32 %v437, %v445
      %v454 = vadd.f32 %v438, %v446
      %v455 = vadd.f32 %v439, %v447
      %v456 = vadd.f32 %v440, %v448
      %v457 = vadd.f32 %v441, %v449
      %v458 = vadd.f32 %v442, %v450
      %v459 = vadd.f32 %v443, %v451
      %v460 = vld [vmem:[#allocation2 + $0x9] sm:$0xff]
      %v461 = vld [vmem:[#allocation2 + $0x11] sm:$0xff]
      %v462 = vld [vmem:[#allocation2 + $0x19] sm:$0xff]
      %v463 = vld [vmem:[#allocation2 + $0x21] sm:$0xff]
      %v464 = vld [vmem:[#allocation2 + $0x29] sm:$0xff]
      %v465 = vld [vmem:[#allocation2 + $0x31] sm:$0xff]
      %v466 = vld [vmem:[#allocation2 + $0x39] sm:$0xff]
      %v467 = vld [vmem:[#allocation2 + $0x41] sm:$0xff]
      %v468 = vadd.f32 %v452, %v460
      %v469 = vadd.f32 %v453, %v461
      %v470 = vadd.f32 %v454, %v462
      %v471 = vadd.f32 %v455, %v463
      %v472 = vadd.f32 %v456, %v464
      %v473 = vadd.f32 %v457, %v465
      %v474 = vadd.f32 %v458, %v466
      %v475 = vadd.f32 %v459, %v467
      %v476 = vld [vmem:[#allocation2 + $0xa] sm:$0xff]
      %v477 = vld [vmem:[#allocation2 + $0x12] sm:$0xff]
      %v478 = vld [vmem:[#allocation2 + $0x1a] sm:$0xff]
      %v479 = vld [vmem:[#allocation2 + $0x22] sm:$0xff]
      %v480 = vld [vmem:[#allocation2 + $0x2a] sm:$0xff]
      %v481 = vld [vmem:[#allocation2 + $0x32] sm:$0xff]
      %v482 = vld [vmem:[#allocation2 + $0x3a] sm:$0xff]
      %v483 = vld [vmem:[#allocation2 + $0x42] sm:$0xff]
      %v484 = vadd.f32 %v468, %v476
      %v485 = vadd.f32 %v469, %v477
      %v486 = vadd.f32 %v470, %v478
      %v487 = vadd.f32 %v471, %v479
      %v488 = vadd.f32 %v472, %v480
      %v489 = vadd.f32 %v473, %v481
      %v490 = vadd.f32 %v474, %v482
      %v491 = vadd.f32 %v475, %v483
      %v492 = vmul.f32 %v484, 0.2
      %v493 = vmul.f32 %v485, 0.2
      %v494 = vmul.f32 %v486, 0.2
      %v495 = vmul.f32 %v487, 0.2
      %v496 = vmul.f32 %v488, 0.2
      %v497 = vmul.f32 %v489, 0.2
      %v498 = vmul.f32 %v490, 0.2
      %v499 = vmul.f32 %v491, 0.2
      %500 = vst.msk [vmem:[%s116 + $0xc0] sm:$0xff] %vm117, %v492
      %501 = vst.msk [vmem:[%s116 + $0xc8] sm:$0xff] %vm117, %v493
      %502 = vst.msk [vmem:[%s116 + $0xd0] sm:$0xff] %vm117, %v494
      %503 = vst.msk [vmem:[%s116 + $0xd8] sm:$0xff] %vm117, %v495
      %504 = vst.msk [vmem:[%s116 + $0xe0] sm:$0xff] %vm117, %v496
      %505 = vst.msk [vmem:[%s116 + $0xe8] sm:$0xff] %vm117, %v497
      %506 = vst.msk [vmem:[%s116 + $0xf0] sm:$0xff] %vm117, %v498
      %507 = vst.msk [vmem:[%s116 + $0xf8] sm:$0xff] %vm117, %v499
      %p508 = scmp.lt.s32.totalorder %s12, 1
      %s509 = scalar_select %p508, %s12, 1
      %s510 = smul.addr %s509, 32
      %s511 = smul.addr %s510, 8
      %s512 = scalar_lea.vmem %s1, %s511
      // Predicated region
      $region25: #{tpu_custom_call.1} parent=23 // pred_check
        %p513 = pneg %p56
      $region26: #{tpu_custom_call.1} parent=23 // pred_check_branch
        %515 = sbr.rel (%p513) target = $region28
      $region27: #{tpu_custom_call.1} parent=23 // pred_region
        _
      $region28: #{tpu_custom_call.1} parent=23 // pred_fallthru
        _
    $region24: #{tpu_custom_call.1} parent=5 // pred_fallthru
      _
    %p516 = scmp.le.s32.totalorder 2, %s7
    // Predicated region
    $region29: #{tpu_custom_call.1} parent=5 // pred_check
      %p517 = pneg %p516
    $region30: #{tpu_custom_call.1} parent=5 // pred_check_branch
      %519 = sbr.rel (%p517) target = $region32
    $region31: #{tpu_custom_call.1} parent=5 // pred_region
      %s520 = ssub.s32 %s7, 2
      // Predicated region
      $region33: #{tpu_custom_call.1} parent=31 // pred_check
        %p521 = pneg %p62
      $region34: #{tpu_custom_call.1} parent=31 // pred_check_branch
        %523 = sbr.rel (%p521) target = $region36
      $region35: #{tpu_custom_call.1} parent=31 // pred_region
        %p524 = scmp.lt.s32.totalorder %s13, 1
        %s525 = scalar_select %p524, %s13, 1
        %s526 = smul.addr %s525, 32
        %s527 = smul.addr %s526, 8
        %s528 = scalar_lea.vmem %s1, %s527
      $region36: #{tpu_custom_call.1} parent=31 // pred_fallthru
        _
    $region32: #{tpu_custom_call.1} parent=5 // pred_fallthru
      _
  $region6: #{tpu_custom_call.1} parent=0 // loop_footer
    %s11 = sadd.s32 1, %s7
  $region7: #{tpu_custom_call.1} parent=0 // loop_footer_branch
    %6 = sbr.rel target = $region3
  $region8: #{tpu_custom_call.1} parent=0 // loop_exit
    _

</llo_original>
